<compile_context>
chip_gen: v5e
topology: v5e:2x2
jax: 0.10.0
libtpu: 0.0.40
codegen_flags: <defaults>
</compile_context>

<pallas_src>
import functools

import jax
import jax.numpy as jnp
from jax.experimental import pallas as pl
from jax.experimental.pallas import tpu as pltpu


# ----------------------------------------------------------------------------
# Fused Pallas kernel: whole per-sample MLP (4 matmuls) per grid step
# ----------------------------------------------------------------------------
def _fused_mlp_kernel(x_ref, w1_ref, w2_ref, w3_ref, wh_ref, o_ref):
    """One weight-sample per grid step.

    x_ref : (B, K0)        shared input, resident in VMEM across the grid
    wN_ref: (K_N + 1, N_N) per-sample weight; last row is the bias
    o_ref : (B, N_pad)     lane-dense head output (cols [0, 2*out) are used)
    """

    def layer(h, w_ref, relu):
        k = w_ref.shape[0] - 1                      # static
        w_mat = w_ref[pl.ds(0, k), :]               # (K, N)
        w_bias = w_ref[pl.ds(k, 1), :]              # (1, N)
        y = jnp.dot(h, w_mat, preferred_element_type=jnp.float32) + w_bias
        return jnp.maximum(y, 0.0) if relu else y

    h = layer(x_ref[...], w1_ref, relu=True)        # (B, 512)
    h = layer(h, w2_ref, relu=True)                 # (B, 128)
    h = layer(h, w3_ref, relu=True)                 # (B, 128)
    o_ref[...] = layer(h, wh_ref, relu=False).astype(o_ref.dtype)


def _fused_mlp_forward(x, w1, w2, w3, wh):
    """x: (B, K0); wN: (S, K_N+1, N_N) full sampled weights (bias = last row);
    wh: (S, H+1, N_pad) concatenated+padded head weights.  Returns (S, B, N_pad)."""
    S = w1.shape[0]
    B, k0 = x.shape
    h0 = w1.shape[-1]
    h1 = w2.shape[-1]
    h2 = w3.shape[-1]
    n_head = wh.shape[-1]

    flops = 2 * S * B * (k0 * h0 + h0 * h1 + h1 * h2 + h2 * n_head)
    bytes_accessed = 4 * (x.size + w1.size + w2.size + w3.size + wh.size
                          + S * B * n_head)
    cost = pl.CostEstimate(flops=flops, transcendentals=0,
                           bytes_accessed=bytes_accessed)

    return pl.pallas_call(
        _fused_mlp_kernel,
        out_shape=jax.ShapeDtypeStruct((S, B, n_head), jnp.float32),
        grid_spec=pltpu.PrefetchScalarGridSpec(
            num_scalar_prefetch=0,
            grid=(S,),
            in_specs=[
                # shared input: same block every step -> DMA'd once, resident
                pl.BlockSpec((B, k0), lambda s: (0, 0)),
                pl.BlockSpec((pl.Squeezed(), k0 + 1, h0), lambda s: (s, 0, 0)),
                pl.BlockSpec((pl.Squeezed(), h0 + 1, h1), lambda s: (s, 0, 0)),
                pl.BlockSpec((pl.Squeezed(), h1 + 1, h2), lambda s: (s, 0, 0)),
                pl.BlockSpec((pl.Squeezed(), h2 + 1, n_head),
                             lambda s: (s, 0, 0)),
            ],
            out_specs=pl.BlockSpec((pl.Squeezed(), B, n_head),
                                   lambda s: (s, 0, 0)),
        ),
        compiler_params=pltpu.CompilerParams(
            # S samples are fully independent -> megacore sharding on v7x
            dimension_semantics=("parallel",)),
        cost_estimate=cost,
    )(x, w1, w2, w3, wh)


# ----------------------------------------------------------------------------
# Parameter construction (mirrors VariationalLayer.__init__ / sample_weight)
# ----------------------------------------------------------------------------
def init_variational_layer(key, input_size, output_size,
                           mu_init_1, mu_init_2, rho_init):
    """Returns (theta_mu, theta_rho) with shapes ((in+1, out), (in+1, out))."""
    k_mu, k_rho = jax.random.split(key)
    in_p1 = input_size + 1
    theta_mu = jax.random.uniform(
        k_mu, (in_p1, output_size), jnp.float32,
        minval=mu_init_1, maxval=mu_init_2)
    theta_rho = jax.random.uniform(
        k_rho, (in_p1, output_size), jnp.float32,
        minval=rho_init, maxval=rho_init + 1.0)
    return theta_mu, theta_rho


def sample_layer_weights(key, theta_mu, theta_rho, n_samples):
    """w = mu + softplus(rho) * eps, eps ~ N(0,1). Shape (S, in+1, out);
    the last row of each sample is the bias (as in the PyTorch module)."""
    eps = jax.random.normal(
        key, (n_samples,) + theta_mu.shape, dtype=jnp.float32)
    return theta_mu[None] + jax.nn.softplus(theta_rho)[None] * eps


def init_strong_variational_net(key, n_samples, input_size, output_size,
                                var=-0.0001):
    hl = [512, 128]
    mu_init = 0.1
    rho_init = -5.0
    keys = jax.random.split(key, 10)
    layer_defs = [
        (input_size, hl[0], -mu_init, mu_init, rho_init),
        (hl[0], hl[1], -mu_init, mu_init, rho_init),
        (hl[1], hl[1], -mu_init, mu_init, rho_init),
        (hl[1], output_size, -mu_init, mu_init, rho_init),
        (hl[1], output_size, var, var + 0.0002, rho_init - 2.0),
    ]
    params = []
    for i, (cin, cout, m1, m2, r0) in enumerate(layer_defs):
        mu, rho = init_variational_layer(keys[2 * i], cin, cout, m1, m2, r0)
        w = sample_layer_weights(keys[2 * i + 1], mu, rho, n_samples)
        params.append(w)            # (S, cin+1, cout)
    return params


# ----------------------------------------------------------------------------
# Forward pass (mirrors StrongVariationalNet.forward)
# ----------------------------------------------------------------------------
def strong_variational_net_forward(x, params, n_samples):
    w1, w2, w3, w4, w42 = params
    out_size = w4.shape[-1]

    # Fuse the two heads (they read identical h) and zero-pad to a
    # 128-lane-dense output slab so the kernel's final store is unmasked.
    head_w = jnp.concatenate([w4, w42], axis=-1)          # (S, 129, 2*out)
    head_width = 2 * out_size
    head_pad = ((head_width + 127) // 128) * 128
    if head_pad > head_width:
        head_w = jnp.pad(head_w,
                         ((0, 0), (0, 0), (0, head_pad - head_width)))

    out = _fused_mlp_forward(x.astype(jnp.float32), w1, w2, w3, head_w)
    y_avg = out[:, :, :out_size]
    rho = out[:, :, out_size:head_width]
    return y_avg, rho


# Pure-JAX reference for correctness checking.
def _reference_forward(x, params, n_samples):
    xs = jnp.broadcast_to(x[None], (n_samples,) + x.shape).astype(jnp.float32)

    def layer(h, w, relu):
        y = jnp.einsum("sbk,skn->sbn", h, w[:, :-1, :]) + w[:, -1:, :]
        return jnp.maximum(y, 0.0) if relu else y

    w1, w2, w3, w4, w42 = params
    h = layer(xs, w1, True)
    h = layer(h, w2, True)
    h = layer(h, w3, True)
    return layer(h, w4, False), layer(h, w42, False)


# ----------------------------------------------------------------------------
if __name__ == "__main__":
    n_samples = 4
    batch = 8
    input_size = 16
    output_size = 4
    plv = 1.0  # prior rho; only used in KL divergence, not in forward

    key = jax.random.PRNGKey(0)
    k_params, k_x = jax.random.split(key)

    params = init_strong_variational_net(
        k_params, n_samples, input_size, output_size)
    x = jax.random.normal(k_x, (batch, input_size), dtype=jnp.float32)

    fwd = jax.jit(functools.partial(
        strong_variational_net_forward, n_samples=n_samples))
    y_avg, rho = fwd(x, params)
    jax.block_until_ready((y_avg, rho))

    # Sanity check against pure-JAX reference.
    y_ref, rho_ref = _reference_forward(x, params, n_samples)
    assert y_avg.shape == (n_samples, batch, output_size)
    assert rho.shape == (n_samples, batch, output_size)
    assert jnp.allclose(y_avg, y_ref, atol=1e-3, rtol=1e-3)
    assert jnp.allclose(rho, rho_ref, atol=1e-3, rtol=1e-3)

    # TODO(synk): kl_divergence_NN / forward_dist (RNG-based) stay in plain JAX;
    # they are not part of the forward hot path.
    print("KERNEL_OK")
</pallas_src>

<mosaic_0001>
module attributes {stable_mosaic.version = 11 : i64} {
  func.func @_fused_mlp_kernel(%arg0: i32, %arg1: memref<8x16xf32, #tpu.memory_space<vmem>>, %arg2: memref<1x17x512xf32, #tpu.memory_space<vmem>>, %arg3: memref<1x513x128xf32, #tpu.memory_space<vmem>>, %arg4: memref<1x129x128xf32, #tpu.memory_space<vmem>>, %arg5: memref<1x129x128xf32, #tpu.memory_space<vmem>>, %arg6: memref<1x8x128xf32, #tpu.memory_space<vmem>>) attributes {dimension_semantics = [#tpu.dimension_semantics<parallel>], iteration_bounds = array<i64: 4>, scalar_prefetch = 0 : i64, scratch_operands = 0 : i64, tpu.core_type = #tpu.core_type<tc>, window_params = [{pipeline_mode = #tpu.pipeline_mode<synchronous>, transform_indices = @transform_0, window_bounds = array<i64: 8, 16>}, {transform_indices = @transform_1, window_bounds = array<i64: 1, 17, 512>}, {transform_indices = @transform_2, window_bounds = array<i64: 1, 513, 128>}, {transform_indices = @transform_3, window_bounds = array<i64: 1, 129, 128>}, {transform_indices = @transform_4, window_bounds = array<i64: 1, 129, 128>}, {transform_indices = @transform_5, window_bounds = array<i64: 1, 8, 128>}]} {
    %c0 = arith.constant 0 : index
    %c0_0 = arith.constant 0 : index
    %0 = vector.load %arg1[%c0, %c0_0] : memref<8x16xf32, #tpu.memory_space<vmem>>, vector<8x16xf32>
    %c0_1 = arith.constant 0 : index
    %c0_2 = arith.constant 0 : index
    %c0_3 = arith.constant 0 : index
    %1 = vector.load %arg2[%c0_1, %c0_2, %c0_3] : memref<1x17x512xf32, #tpu.memory_space<vmem>>, vector<1x16x512xf32>
    %2 = vector.shape_cast %1 : vector<1x16x512xf32> to vector<16x512xf32>
    %c0_4 = arith.constant 0 : index
    %c16 = arith.constant 16 : index
    %c0_5 = arith.constant 0 : index
    %3 = vector.load %arg2[%c0_4, %c16, %c0_5] : memref<1x17x512xf32, #tpu.memory_space<vmem>>, vector<1x1x512xf32>
    %4 = vector.shape_cast %3 : vector<1x1x512xf32> to vector<1x512xf32>
    %cst = arith.constant dense<0.000000e+00> : vector<8x512xf32>
    %5 = tpu.matmul %0, %2, %cst {dimension_numbers = #tpu.dot_dimension_numbers<[1], [0], [0], [1], [0, 0, 1, 1], [], []>} : vector<8x16xf32>, vector<16x512xf32>, vector<8x512xf32> -> vector<8x512xf32>
    %6 = vector.broadcast %4 : vector<1x512xf32> to vector<8x512xf32>
    %7 = arith.addf %5, %6 : vector<8x512xf32>
    %cst_6 = arith.constant 0.000000e+00 : f32
    %8 = vector.broadcast %cst_6 : f32 to vector<8x512xf32>
    %9 = arith.maximumf %7, %8 : vector<8x512xf32>
    %c0_7 = arith.constant 0 : index
    %c0_8 = arith.constant 0 : index
    %c0_9 = arith.constant 0 : index
    %10 = vector.load %arg3[%c0_7, %c0_8, %c0_9] : memref<1x513x128xf32, #tpu.memory_space<vmem>>, vector<1x512x128xf32>
    %11 = vector.shape_cast %10 : vector<1x512x128xf32> to vector<512x128xf32>
    %c0_10 = arith.constant 0 : index
    %c512 = arith.constant 512 : index
    %c0_11 = arith.constant 0 : index
    %12 = vector.load %arg3[%c0_10, %c512, %c0_11] : memref<1x513x128xf32, #tpu.memory_space<vmem>>, vector<1x1x128xf32>
    %13 = vector.shape_cast %12 : vector<1x1x128xf32> to vector<1x128xf32>
    %cst_12 = arith.constant dense<0.000000e+00> : vector<8x128xf32>
    %14 = tpu.matmul %9, %11, %cst_12 {dimension_numbers = #tpu.dot_dimension_numbers<[1], [0], [0], [1], [0, 0, 1, 1], [], []>} : vector<8x512xf32>, vector<512x128xf32>, vector<8x128xf32> -> vector<8x128xf32>
    %15 = vector.broadcast %13 : vector<1x128xf32> to vector<8x128xf32>
    %16 = arith.addf %14, %15 : vector<8x128xf32>
    %cst_13 = arith.constant 0.000000e+00 : f32
    %17 = vector.broadcast %cst_13 : f32 to vector<8x128xf32>
    %18 = arith.maximumf %16, %17 : vector<8x128xf32>
    %c0_14 = arith.constant 0 : index
    %c0_15 = arith.constant 0 : index
    %c0_16 = arith.constant 0 : index
    %19 = vector.load %arg4[%c0_14, %c0_15, %c0_16] : memref<1x129x128xf32, #tpu.memory_space<vmem>>, vector<1x128x128xf32>
    %20 = vector.shape_cast %19 : vector<1x128x128xf32> to vector<128x128xf32>
    %c0_17 = arith.constant 0 : index
    %c128 = arith.constant 128 : index
    %c0_18 = arith.constant 0 : index
    %21 = vector.load %arg4[%c0_17, %c128, %c0_18] : memref<1x129x128xf32, #tpu.memory_space<vmem>>, vector<1x1x128xf32>
    %22 = vector.shape_cast %21 : vector<1x1x128xf32> to vector<1x128xf32>
    %cst_19 = arith.constant dense<0.000000e+00> : vector<8x128xf32>
    %23 = tpu.matmul %18, %20, %cst_19 {dimension_numbers = #tpu.dot_dimension_numbers<[1], [0], [0], [1], [0, 0, 1, 1], [], []>} : vector<8x128xf32>, vector<128x128xf32>, vector<8x128xf32> -> vector<8x128xf32>
    %24 = vector.broadcast %22 : vector<1x128xf32> to vector<8x128xf32>
    %25 = arith.addf %23, %24 : vector<8x128xf32>
    %cst_20 = arith.constant 0.000000e+00 : f32
    %26 = vector.broadcast %cst_20 : f32 to vector<8x128xf32>
    %27 = arith.maximumf %25, %26 : vector<8x128xf32>
    %c0_21 = arith.constant 0 : index
    %c0_22 = arith.constant 0 : index
    %c0_23 = arith.constant 0 : index
    %28 = vector.load %arg5[%c0_21, %c0_22, %c0_23] : memref<1x129x128xf32, #tpu.memory_space<vmem>>, vector<1x128x128xf32>
    %29 = vector.shape_cast %28 : vector<1x128x128xf32> to vector<128x128xf32>
    %c0_24 = arith.constant 0 : index
    %c128_25 = arith.constant 128 : index
    %c0_26 = arith.constant 0 : index
    %30 = vector.load %arg5[%c0_24, %c128_25, %c0_26] : memref<1x129x128xf32, #tpu.memory_space<vmem>>, vector<1x1x128xf32>
    %31 = vector.shape_cast %30 : vector<1x1x128xf32> to vector<1x128xf32>
    %cst_27 = arith.constant dense<0.000000e+00> : vector<8x128xf32>
    %32 = tpu.matmul %27, %29, %cst_27 {dimension_numbers = #tpu.dot_dimension_numbers<[1], [0], [0], [1], [0, 0, 1, 1], [], []>} : vector<8x128xf32>, vector<128x128xf32>, vector<8x128xf32> -> vector<8x128xf32>
    %33 = vector.broadcast %31 : vector<1x128xf32> to vector<8x128xf32>
    %34 = arith.addf %32, %33 : vector<8x128xf32>
    %c0_28 = arith.constant 0 : index
    %c0_29 = arith.constant 0 : index
    %c0_30 = arith.constant 0 : index
    %35 = vector.load %arg6[%c0_28, %c0_29, %c0_30] : memref<1x8x128xf32, #tpu.memory_space<vmem>>, vector<1x8x128xf32>
    %36 = vector.shape_cast %35 : vector<1x8x128xf32> to vector<8x128xf32>
    %37 = vector.shape_cast %34 : vector<8x128xf32> to vector<1x8x128xf32>
    tpu.vector_store %arg6[%c0_28, %c0_29, %c0_30], %37 {strides = array<i32>} : memref<1x8x128xf32, #tpu.memory_space<vmem>>, vector<1x8x128xf32>,
    return
  }
  func.func @transform_0(%arg0: i32) -> (i32, i32) {
    %c0_i32 = arith.constant 0 : i32
    %c0_i32_0 = arith.constant 0 : i32
    %c0_i32_1 = arith.constant 0 : i32
    return %c0_i32, %c0_i32_0 : i32, i32
  }
  func.func @transform_1(%arg0: i32) -> (i32, i32, i32) {
    %c0_i32 = arith.constant 0 : i32
    %c0_i32_0 = arith.constant 0 : i32
    %c0_i32_1 = arith.constant 0 : i32
    return %arg0, %c0_i32, %c0_i32_0 : i32, i32, i32
  }
  func.func @transform_2(%arg0: i32) -> (i32, i32, i32) {
    %c0_i32 = arith.constant 0 : i32
    %c0_i32_0 = arith.constant 0 : i32
    %c0_i32_1 = arith.constant 0 : i32
    return %arg0, %c0_i32, %c0_i32_0 : i32, i32, i32
  }
  func.func @transform_3(%arg0: i32) -> (i32, i32, i32) {
    %c0_i32 = arith.constant 0 : i32
    %c0_i32_0 = arith.constant 0 : i32
    %c0_i32_1 = arith.constant 0 : i32
    return %arg0, %c0_i32, %c0_i32_0 : i32, i32, i32
  }
  func.func @transform_4(%arg0: i32) -> (i32, i32, i32) {
    %c0_i32 = arith.constant 0 : i32
    %c0_i32_0 = arith.constant 0 : i32
    %c0_i32_1 = arith.constant 0 : i32
    return %arg0, %c0_i32, %c0_i32_0 : i32, i32, i32
  }
  func.func @transform_5(%arg0: i32) -> (i32, i32, i32) {
    %c0_i32 = arith.constant 0 : i32
    %c0_i32_0 = arith.constant 0 : i32
    %c0_i32_1 = arith.constant 0 : i32
    return %arg0, %c0_i32, %c0_i32_0 : i32, i32, i32
  }
}

</mosaic_0001>

<llo_original>
// kernel: strong_variational_net_forward.1
$region0: #{strong_variational_net_forward.1}
  #allocation0 [shape = 'u32[]', space=smem, size = 0x4, offset = 0x4, fixed_abs, tag = 'smem constant byte address 0x4 - core index']
  #allocation1 [shape = 'u32[72,128]{1,0:T(1,128)}', space=vmem, size = 0x9000, scoped, tag = 'internal scratch']
  %s0 = inlined_call_operand.vmem [shape: f32[8,16], index: 0, kind: input, shape index: {}]
  %s1 = inlined_call_operand.vmem [shape: f32[4,17,512], index: 1, kind: input, shape index: {}]
  %s2 = inlined_call_operand.vmem [shape: f32[4,513,128], index: 2, kind: input, shape index: {}]
  %s3 = inlined_call_operand.vmem [shape: f32[4,129,128], index: 3, kind: input, shape index: {}]
  %s4 = inlined_call_operand.vmem [shape: f32[4,129,128], index: 4, kind: input, shape index: {}]
  %s5 = inlined_call_operand.vmem [shape: f32[4,8,128], index: 5, kind: output, shape index: {}]
  %s6 = sld [smem:[#allocation0]]
  $region53: #{strong_variational_net_forward.1} parent=0
    _
  %s8 = ssub.s32 1, %s6
  %s9 = scalar_select 0, %s8, %s6
  loop: start=0, step=1, limit=6
  $region2: #{strong_variational_net_forward.1} parent=0 // loop_pre_header
    _
  $region3: #{strong_variational_net_forward.1} parent=0 // loop_header
    %s11 = sphi 0, %s15
    %p12 = scmp.ge.s32.totalorder %s11, 6
    %s19 = sphi 0, %s19
    %s21 = sphi 0, %s19
    %s22 = sphi 0, %s21
    %s36 = sphi 0, %s22
    %s42 = sphi 0, %s44
    %s45 = sphi 0, %s42
    %s46 = sphi 0, %s45
    %s62 = sphi 0, %s46
    %s68 = sphi 0, %s70
    %s71 = sphi 0, %s68
    %s72 = sphi 0, %s71
    %s88 = sphi 0, %s72
    %s94 = sphi 0, %s96
    %s97 = sphi 0, %s94
    %s98 = sphi 0, %s97
    %s114 = sphi 0, %s98
    %s120 = sphi 0, %s122
    %s123 = sphi 0, %s120
    %s124 = sphi 0, %s123
    %s140 = sphi 0, %s124
    %s146 = sphi 0, %s148
    %s149 = sphi 0, %s146
    %s150 = sphi 0, %s149
    %s166 = sphi 0, %s150
  $region4: #{strong_variational_net_forward.1} parent=0 // loop_header_branch
    %14 = sbr.rel (%p12) target = $region8
  $region5: #{strong_variational_net_forward.1} parent=0 // loop_body
    %s16 = ssub.s32 %s11, 1
    %s17 = ssub.s32 %s11, 2
    %s18 = sadd.s32 %s11, 1
    %s20 = sadd.s32 %s19, 1
    %p23 = scmp.eq.s32.totalorder %s11, 3
    %p24 = scmp.ne.s32.totalorder %s19, %s21
    %p25 = scmp.eq.s32.totalorder %s11, 0
    %p26 = por %p24, %p25
    %p27 = scmp.ne.s32.totalorder %s19, %s21
    %p28 = scmp.eq.s32.totalorder %s16, 3
    %p29 = por %p27, %p28
    %p30 = scmp.ne.s32.totalorder %s21, %s22
    %p31 = scmp.eq.s32.totalorder %s16, 0
    %p32 = por %p30, %p31
    %p33 = scmp.ne.s32.totalorder %s21, %s22
    %p34 = scmp.eq.s32.totalorder %s17, 3
    %p35 = por %p33, %p34
    %p37 = scmp.ne.s32.totalorder %s22, %s36
    %p38 = scmp.eq.s32.totalorder %s17, 0
    %p39 = por %p37, %p38
    %s40 = ssub.s32 %s11, %s18
    %p41 = scmp.eq.s32.totalorder %s40, 0
    %s43 = sadd.s32 %s42, 1
    %s44 = scalar_select %p41, %s42, %s43
    %p47 = pneg %p41
    %p48 = scmp.eq.s32.totalorder %s11, 3
    %p49 = por %p47, %p48
    %p50 = scmp.ne.s32.totalorder %s42, %s45
    %p51 = scmp.eq.s32.totalorder %s11, 0
    %p52 = por %p50, %p51
    %p53 = scmp.ne.s32.totalorder %s42, %s45
    %p54 = scmp.eq.s32.totalorder %s16, 3
    %p55 = por %p53, %p54
    %p56 = scmp.ne.s32.totalorder %s45, %s46
    %p57 = scmp.eq.s32.totalorder %s16, 0
    %p58 = por %p56, %p57
    %p59 = scmp.ne.s32.totalorder %s45, %s46
    %p60 = scmp.eq.s32.totalorder %s17, 3
    %p61 = por %p59, %p60
    %p63 = scmp.ne.s32.totalorder %s46, %s62
    %p64 = scmp.eq.s32.totalorder %s17, 0
    %p65 = por %p63, %p64
    %s66 = ssub.s32 %s11, %s18
    %p67 = scmp.eq.s32.totalorder %s66, 0
    %s69 = sadd.s32 %s68, 1
    %s70 = scalar_select %p67, %s68, %s69
    %p73 = pneg %p67
    %p74 = scmp.eq.s32.totalorder %s11, 3
    %p75 = por %p73, %p74
    %p76 = scmp.ne.s32.totalorder %s68, %s71
    %p77 = scmp.eq.s32.totalorder %s11, 0
    %p78 = por %p76, %p77
    %p79 = scmp.ne.s32.totalorder %s68, %s71
    %p80 = scmp.eq.s32.totalorder %s16, 3
    %p81 = por %p79, %p80
    %p82 = scmp.ne.s32.totalorder %s71, %s72
    %p83 = scmp.eq.s32.totalorder %s16, 0
    %p84 = por %p82, %p83
    %p85 = scmp.ne.s32.totalorder %s71, %s72
    %p86 = scmp.eq.s32.totalorder %s17, 3
    %p87 = por %p85, %p86
    %p89 = scmp.ne.s32.totalorder %s72, %s88
    %p90 = scmp.eq.s32.totalorder %s17, 0
    %p91 = por %p89, %p90
    %s92 = ssub.s32 %s11, %s18
    %p93 = scmp.eq.s32.totalorder %s92, 0
    %s95 = sadd.s32 %s94, 1
    %s96 = scalar_select %p93, %s94, %s95
    %p99 = pneg %p93
    %p100 = scmp.eq.s32.totalorder %s11, 3
    %p101 = por %p99, %p100
    %p102 = scmp.ne.s32.totalorder %s94, %s97
    %p103 = scmp.eq.s32.totalorder %s11, 0
    %p104 = por %p102, %p103
    %p105 = scmp.ne.s32.totalorder %s94, %s97
    %p106 = scmp.eq.s32.totalorder %s16, 3
    %p107 = por %p105, %p106
    %p108 = scmp.ne.s32.totalorder %s97, %s98
    %p109 = scmp.eq.s32.totalorder %s16, 0
    %p110 = por %p108, %p109
    %p111 = scmp.ne.s32.totalorder %s97, %s98
    %p112 = scmp.eq.s32.totalorder %s17, 3
    %p113 = por %p111, %p112
    %p115 = scmp.ne.s32.totalorder %s98, %s114
    %p116 = scmp.eq.s32.totalorder %s17, 0
    %p117 = por %p115, %p116
    %s118 = ssub.s32 %s11, %s18
    %p119 = scmp.eq.s32.totalorder %s118, 0
    %s121 = sadd.s32 %s120, 1
    %s122 = scalar_select %p119, %s120, %s121
    %p125 = pneg %p119
    %p126 = scmp.eq.s32.totalorder %s11, 3
    %p127 = por %p125, %p126
    %p128 = scmp.ne.s32.totalorder %s120, %s123
    %p129 = scmp.eq.s32.totalorder %s11, 0
    %p130 = por %p128, %p129
    %p131 = scmp.ne.s32.totalorder %s120, %s123
    %p132 = scmp.eq.s32.totalorder %s16, 3
    %p133 = por %p131, %p132
    %p134 = scmp.ne.s32.totalorder %s123, %s124
    %p135 = scmp.eq.s32.totalorder %s16, 0
    %p136 = por %p134, %p135
    %p137 = scmp.ne.s32.totalorder %s123, %s124
    %p138 = scmp.eq.s32.totalorder %s17, 3
    %p139 = por %p137, %p138
    %p141 = scmp.ne.s32.totalorder %s124, %s140
    %p142 = scmp.eq.s32.totalorder %s17, 0
    %p143 = por %p141, %p142
    %s144 = ssub.s32 %s11, %s18
    %p145 = scmp.eq.s32.totalorder %s144, 0
    %s147 = sadd.s32 %s146, 1
    %s148 = scalar_select %p145, %s146, %s147
    %p151 = pneg %p145
    %p152 = scmp.eq.s32.totalorder %s11, 3
    %p153 = por %p151, %p152
    %p154 = scmp.ne.s32.totalorder %s146, %s149
    %p155 = scmp.eq.s32.totalorder %s11, 0
    %p156 = por %p154, %p155
    %p157 = scmp.ne.s32.totalorder %s146, %s149
    %p158 = scmp.eq.s32.totalorder %s16, 3
    %p159 = por %p157, %p158
    %p160 = scmp.ne.s32.totalorder %s149, %s150
    %p161 = scmp.eq.s32.totalorder %s16, 0
    %p162 = por %p160, %p161
    %p163 = scmp.ne.s32.totalorder %s149, %s150
    %p164 = scmp.eq.s32.totalorder %s17, 3
    %p165 = por %p163, %p164
    %p167 = scmp.ne.s32.totalorder %s150, %s166
    %p168 = scmp.eq.s32.totalorder %s17, 0
    %p169 = por %p167, %p168
    %p170 = scmp.le.s32.totalorder 1, %s11
    %p171 = scmp.lt.s32.totalorder %s11, 5
    %p172 = pnand %p170, %p171
    %p173 = pneg %p172
    // Predicated region
    $region9: #{strong_variational_net_forward.1} parent=5 // pred_check
      _
    $region10: #{strong_variational_net_forward.1} parent=5 // pred_check_branch
      %175 = sbr.rel (%p172) target = $region12
    $region11: #{strong_variational_net_forward.1} parent=5 // pred_region
      %s176 = ssub.s32 %s11, 1
      // Predicated region
      $region13: #{strong_variational_net_forward.1} parent=11 // pred_check
        %p177 = pneg %p32
      $region14: #{strong_variational_net_forward.1} parent=11 // pred_check_branch
        %179 = sbr.rel (%p177) target = $region16
      $region15: #{strong_variational_net_forward.1} parent=11 // pred_region
        _
      $region16: #{strong_variational_net_forward.1} parent=11 // pred_fallthru
        _
    $region12: #{strong_variational_net_forward.1} parent=5 // pred_fallthru
      _
    %p180 = scmp.lt.s32.totalorder %s11, 4
    // Predicated region
    $region17: #{strong_variational_net_forward.1} parent=5 // pred_check
      %p181 = pneg %p180
    $region18: #{strong_variational_net_forward.1} parent=5 // pred_check_branch
      %183 = sbr.rel (%p181) target = $region20
    $region19: #{strong_variational_net_forward.1} parent=5 // pred_region
      // Predicated region
      $region21: #{strong_variational_net_forward.1} parent=19 // pred_check
        %p184 = pneg %p52
      $region22: #{strong_variational_net_forward.1} parent=19 // pred_check_branch
        %186 = sbr.rel (%p184) target = $region24
      $region23: #{strong_variational_net_forward.1} parent=19 // pred_region
        %p187 = scmp.lt.s32.totalorder %s11, 3
        %s188 = scalar_select %p187, %s11, 3
        %s189 = smul.addr %s188, 12
        %s190 = smul.addr %s189, 8
        %s191 = scalar_lea.vmem %s1, %s190
      $region24: #{strong_variational_net_forward.1} parent=19 // pred_fallthru
        _
      // Predicated region
      $region25: #{strong_variational_net_forward.1} parent=19 // pred_check
        %p192 = pneg %p78
      $region26: #{strong_variational_net_forward.1} parent=19 // pred_check_branch
        %194 = sbr.rel (%p192) target = $region28
      $region27: #{strong_variational_net_forward.1} parent=19 // pred_region
        %p195 = scmp.lt.s32.totalorder %s11, 3
        %s196 = scalar_select %p195, %s11, 3
        %s197 = smul.addr %s196, 65
        %s198 = smul.addr %s197, 8
        %s199 = scalar_lea.vmem %s2, %s198
      $region28: #{strong_variational_net_forward.1} parent=19 // pred_fallthru
        _
      // Predicated region
      $region29: #{strong_variational_net_forward.1} parent=19 // pred_check
        %p200 = pneg %p104
      $region30: #{strong_variational_net_forward.1} parent=19 // pred_check_branch
        %202 = sbr.rel (%p200) target = $region32
      $region31: #{strong_variational_net_forward.1} parent=19 // pred_region
        %p203 = scmp.lt.s32.totalorder %s11, 3
        %s204 = scalar_select %p203, %s11, 3
        %s205 = smul.addr %s204, 17
        %s206 = smul.addr %s205, 8
        %s207 = scalar_lea.vmem %s3, %s206
      $region32: #{strong_variational_net_forward.1} parent=19 // pred_fallthru
        _
      // Predicated region
      $region33: #{strong_variational_net_forward.1} parent=19 // pred_check
        %p208 = pneg %p130
      $region34: #{strong_variational_net_forward.1} parent=19 // pred_check_branch
        %210 = sbr.rel (%p208) target = $region36
      $region35: #{strong_variational_net_forward.1} parent=19 // pred_region
        %p211 = scmp.lt.s32.totalorder %s11, 3
        %s212 = scalar_select %p211, %s11, 3
        %s213 = smul.addr %s212, 17
        %s214 = smul.addr %s213, 8
        %s215 = scalar_lea.vmem %s4, %s214
      $region36: #{strong_variational_net_forward.1} parent=19 // pred_fallthru
        _
    $region20: #{strong_variational_net_forward.1} parent=5 // pred_fallthru
      _
    %p216 = scmp.le.s32.totalorder 1, %s11
    %p217 = scmp.lt.s32.totalorder %s11, 5
    %p218 = pnand %p216, %p217
    %p219 = pneg %p218
    // Predicated region
    $region37: #{strong_variational_net_forward.1} parent=5 // pred_check
      _
    $region38: #{strong_variational_net_forward.1} parent=5 // pred_check_branch
      %221 = sbr.rel (%p218) target = $region40
    $region39: #{strong_variational_net_forward.1} parent=5 // pred_region
      %s222 = ssub.s32 %s11, 1
      %p223 = pneg %p32
      %p224 = pneg %p29
      %p225 = scmp.lt.s32.totalorder %s16, 3
      %s226 = scalar_select %p225, %s16, 3
      %s227 = smul.addr %s226, 12
      %s228 = smul.addr %s227, 8
      %s229 = scalar_lea.vmem %s1, %s228
      %p230 = pneg %p58
      %p231 = pneg %p55
      %p232 = scmp.lt.s32.totalorder %s16, 3
      %s233 = scalar_select %p232, %s16, 3
      %s234 = smul.addr %s233, 65
      %s235 = smul.addr %s234, 8
      %s236 = scalar_lea.vmem %s2, %s235
      %p237 = pneg %p84
      %p238 = pneg %p81
      %p239 = scmp.lt.s32.totalorder %s16, 3
      %s240 = scalar_select %p239, %s16, 3
      %s241 = smul.addr %s240, 17
      %s242 = smul.addr %s241, 8
      %s243 = scalar_lea.vmem %s3, %s242
      %p244 = pneg %p110
      %p245 = pneg %p107
      %p246 = scmp.lt.s32.totalorder %s16, 3
      %s247 = scalar_select %p246, %s16, 3
      %s248 = smul.addr %s247, 17
      %s249 = smul.addr %s248, 8
      %s250 = scalar_lea.vmem %s4, %s249
      %p251 = pneg %p136
      %p252 = pneg %p133
      %p253 = pneg %p162
      %p254 = pneg %p159
      %p255 = scmp.lt.s32.totalorder %s16, 3
      %s256 = scalar_select %p255, %s16, 3
      %s257 = smul.addr %s256, 8
      %s258 = scalar_lea.vmem %s5, %s257
      %p259 = scmp.lt.s32.totalorder %s16, 3
      %s260 = scalar_select %p259, %s16, 3
      %s261 = smul.addr %s260, 12
      %s262 = smul.addr %s261, 8
      %s263 = scalar_lea.vmem %s1, %s262
      %p264 = scmp.lt.s32.totalorder %s16, 3
      %s265 = scalar_select %p264, %s16, 3
      %s266 = smul.addr %s265, 65
      %s267 = smul.addr %s266, 8
      %s268 = scalar_lea.vmem %s2, %s267
      %p269 = scmp.lt.s32.totalorder %s16, 3
      %s270 = scalar_select %p269, %s16, 3
      %s271 = smul.addr %s270, 17
      %s272 = smul.addr %s271, 8
      %s273 = scalar_lea.vmem %s3, %s272
      %p274 = scmp.lt.s32.totalorder %s16, 3
      %s275 = scalar_select %p274, %s16, 3
      %s276 = smul.addr %s275, 17
      %s277 = smul.addr %s276, 8
      %s278 = scalar_lea.vmem %s4, %s277
      %p279 = scmp.lt.s32.totalorder %s16, 3
      %s280 = scalar_select %p279, %s16, 3
      %s281 = smul.addr %s280, 8
      %s282 = scalar_lea.vmem %s5, %s281
      %v283 = vld [vmem:[%s0] sm:$0xff]
      %v284 = vld [vmem:[%s263] sm:$0xff]
      %v285 = vld [vmem:[%s263 + $0x8] sm:$0xff]
      %v286 = vld [vmem:[%s263 + $0x10] sm:$0xff]
      %v287 = vld [vmem:[%s263 + $0x18] sm:$0xff]
      %v288 = vld [vmem:[%s263 + $0x20] sm:$0xff]
      %v289 = vld [vmem:[%s263 + $0x28] sm:$0xff]
      %v290 = vld [vmem:[%s263 + $0x30] sm:$0xff]
      %v291 = vld [vmem:[%s263 + $0x38] sm:$0xff]
      %s292 = scalar_lea.vmem %s263, 64
      %v293 = vld [vmem:[%s292] ss:$8 sm:$0xf]
      %v295 = vperm.slane %v293, 0
      %v296 = vperm.slane %v293, 1
      %v297 = vperm.slane %v293, 2
      %v298 = vperm.slane %v293, 3
      %vm303 = vcmask 130048
      %v305 = vsel %vm303, %v283, 0
      %307 = vmatpush.msra.mxu0 0.0
      %308 = vmatpush.msra.mxu0 0.0
      %309 = vmatpush.msra.mxu0 0.0
      %310 = vmatpush.msra.mxu0 0.0
      %311 = vmatpush.msra.mxu0 0.0
      %312 = vmatpush.msra.mxu0 0.0
      %313 = vmatpush.msra.mxu0 0.0
      %314 = vmatpush.msra.mxu0 0.0
      %315 = vmatpush.msra.mxu0 0.0
      %316 = vmatpush.msra.mxu0 0.0
      %317 = vmatpush.msra.mxu0 0.0
      %318 = vmatpush.msra.mxu0 0.0
      %319 = vmatpush.msra.mxu0 0.0
      %320 = vmatpush.msra.mxu0 0.0
      %321 = vmatpush.msra.mxu0 %v288
      %322 = vmatpush.msra.mxu0 %v284
      %323 = vmatmul.f32.gmra.mxu0 %v305
      %v324 = vpop.f32.mrf.mxu0
      %v325 = vadd.f32 %v295, %v324
      %326 = vdwg.mxu0
      %327 = vmatpush.msra.mxu0 0.0
      %328 = vmatpush.msra.mxu0 0.0
      %329 = vmatpush.msra.mxu0 0.0
      %330 = vmatpush.msra.mxu0 0.0
      %331 = vmatpush.msra.mxu0 0.0
      %332 = vmatpush.msra.mxu0 0.0
      %333 = vmatpush.msra.mxu0 0.0
      %334 = vmatpush.msra.mxu0 0.0
      %335 = vmatpush.msra.mxu0 0.0
      %336 = vmatpush.msra.mxu0 0.0
      %337 = vmatpush.msra.mxu0 0.0
      %338 = vmatpush.msra.mxu0 0.0
      %339 = vmatpush.msra.mxu0 0.0
      %340 = vmatpush.msra.mxu0 0.0
      %341 = vmatpush.msra.mxu0 %v289
      %342 = vmatpush.msra.mxu0 %v285
      %343 = vmatmul.f32.gmra.mxu0 %v305
      %v344 = vpop.f32.mrf.mxu0
      %v345 = vadd.f32 %v296, %v344
      %346 = vdwg.mxu0
      %347 = vmatpush.msra.mxu0 0.0
      %348 = vmatpush.msra.mxu0 0.0
      %349 = vmatpush.msra.mxu0 0.0
      %350 = vmatpush.msra.mxu0 0.0
      %351 = vmatpush.msra.mxu0 0.0
      %352 = vmatpush.msra.mxu0 0.0
      %353 = vmatpush.msra.mxu0 0.0
      %354 = vmatpush.msra.mxu0 0.0
      %355 = vmatpush.msra.mxu0 0.0
      %356 = vmatpush.msra.mxu0 0.0
      %357 = vmatpush.msra.mxu0 0.0
      %358 = vmatpush.msra.mxu0 0.0
      %359 = vmatpush.msra.mxu0 0.0
      %360 = vmatpush.msra.mxu0 0.0
      %361 = vmatpush.msra.mxu0 %v290
      %362 = vmatpush.msra.mxu0 %v286
      %363 = vmatmul.f32.gmra.mxu0 %v305
      %v364 = vpop.f32.mrf.mxu0
      %v365 = vadd.f32 %v297, %v364
      %366 = vdwg.mxu0
      %367 = vmatpush.msra.mxu0 0.0
      %368 = vmatpush.msra.mxu0 0.0
      %369 = vmatpush.msra.mxu0 0.0
      %370 = vmatpush.msra.mxu0 0.0
      %371 = vmatpush.msra.mxu0 0.0
      %372 = vmatpush.msra.mxu0 0.0
      %373 = vmatpush.msra.mxu0 0.0
      %374 = vmatpush.msra.mxu0 0.0
      %375 = vmatpush.msra.mxu0 0.0
      %376 = vmatpush.msra.mxu0 0.0
      %377 = vmatpush.msra.mxu0 0.0
      %378 = vmatpush.msra.mxu0 0.0
      %379 = vmatpush.msra.mxu0 0.0
      %380 = vmatpush.msra.mxu0 0.0
      %381 = vmatpush.msra.mxu0 %v291
      %382 = vmatpush.msra.mxu0 %v287
      %383 = vmatmul.f32.gmra.mxu0 %v305
      %v384 = vpop.f32.mrf.mxu0
      %v385 = vadd.f32 %v298, %v384
      %386 = vdwg.mxu0
      %v387 = vmax.f32 %v325, 0.0
      %v388 = vmax.f32 %v345, 0.0
      %v389 = vmax.f32 %v365, 0.0
      %v390 = vmax.f32 %v385, 0.0
      %v391 = vld [vmem:[%s268] sm:$0xff]
      %v392 = vld [vmem:[%s268 + $0x8] sm:$0xff]
      %v393 = vld [vmem:[%s268 + $0x10] sm:$0xff]
      %v394 = vld [vmem:[%s268 + $0x18] sm:$0xff]
      %v395 = vld [vmem:[%s268 + $0x20] sm:$0xff]
      %v396 = vld [vmem:[%s268 + $0x28] sm:$0xff]
      %v397 = vld [vmem:[%s268 + $0x30] sm:$0xff]
      %v398 = vld [vmem:[%s268 + $0x38] sm:$0xff]
      %v399 = vld [vmem:[%s268 + $0x40] sm:$0xff]
      %v400 = vld [vmem:[%s268 + $0x48] sm:$0xff]
      %v401 = vld [vmem:[%s268 + $0x50] sm:$0xff]
      %v402 = vld [vmem:[%s268 + $0x58] sm:$0xff]
      %v403 = vld [vmem:[%s268 + $0x60] sm:$0xff]
      %v404 = vld [vmem:[%s268 + $0x68] sm:$0xff]
      %v405 = vld [vmem:[%s268 + $0x70] sm:$0xff]
      %v406 = vld [vmem:[%s268 + $0x78] sm:$0xff]
      %v407 = vld [vmem:[%s268 + $0x80] sm:$0xff]
      %v408 = vld [vmem:[%s268 + $0x88] sm:$0xff]
      %v409 = vld [vmem:[%s268 + $0x90] sm:$0xff]
      %v410 = vld [vmem:[%s268 + $0x98] sm:$0xff]
      %v411 = vld [vmem:[%s268 + $0xa0] sm:$0xff]
      %v412 = vld [vmem:[%s268 + $0xa8] sm:$0xff]
      %v413 = vld [vmem:[%s268 + $0xb0] sm:$0xff]
      %v414 = vld [vmem:[%s268 + $0xb8] sm:$0xff]
      %v415 = vld [vmem:[%s268 + $0xc0] sm:$0xff]
      %v416 = vld [vmem:[%s268 + $0xc8] sm:$0xff]
      %v417 = vld [vmem:[%s268 + $0xd0] sm:$0xff]
      %v418 = vld [vmem:[%s268 + $0xd8] sm:$0xff]
      %v419 = vld [vmem:[%s268 + $0xe0] sm:$0xff]
      %v420 = vld [vmem:[%s268 + $0xe8] sm:$0xff]
      %v421 = vld [vmem:[%s268 + $0xf0] sm:$0xff]
      %v422 = vld [vmem:[%s268 + $0xf8] sm:$0xff]
      %v423 = vld [vmem:[%s268 + $0x100] sm:$0xff]
      %v424 = vld [vmem:[%s268 + $0x108] sm:$0xff]
      %v425 = vld [vmem:[%s268 + $0x110] sm:$0xff]
      %v426 = vld [vmem:[%s268 + $0x118] sm:$0xff]
      %v427 = vld [vmem:[%s268 + $0x120] sm:$0xff]
      %v428 = vld [vmem:[%s268 + $0x128] sm:$0xff]
      %v429 = vld [vmem:[%s268 + $0x130] sm:$0xff]
      %v430 = vld [vmem:[%s268 + $0x138] sm:$0xff]
      %v431 = vld [vmem:[%s268 + $0x140] sm:$0xff]
      %v432 = vld [vmem:[%s268 + $0x148] sm:$0xff]
      %v433 = vld [vmem:[%s268 + $0x150] sm:$0xff]
      %v434 = vld [vmem:[%s268 + $0x158] sm:$0xff]
      %v435 = vld [vmem:[%s268 + $0x160] sm:$0xff]
      %v436 = vld [vmem:[%s268 + $0x168] sm:$0xff]
      %v437 = vld [vmem:[%s268 + $0x170] sm:$0xff]
      %v438 = vld [vmem:[%s268 + $0x178] sm:$0xff]
      %v439 = vld [vmem:[%s268 + $0x180] sm:$0xff]
      %v440 = vld [vmem:[%s268 + $0x188] sm:$0xff]
      %v441 = vld [vmem:[%s268 + $0x190] sm:$0xff]
      %v442 = vld [vmem:[%s268 + $0x198] sm:$0xff]
      %v443 = vld [vmem:[%s268 + $0x1a0] sm:$0xff]
      %v444 = vld [vmem:[%s268 + $0x1a8] sm:$0xff]
      %v445 = vld [vmem:[%s268 + $0x1b0] sm:$0xff]
      %v446 = vld [vmem:[%s268 + $0x1b8] sm:$0xff]
      %v447 = vld [vmem:[%s268 + $0x1c0] sm:$0xff]
      %v448 = vld [vmem:[%s268 + $0x1c8] sm:$0xff]
      %v449 = vld [vmem:[%s268 + $0x1d0] sm:$0xff]
      %v450 = vld [vmem:[%s268 + $0x1d8] sm:$0xff]
      %v451 = vld [vmem:[%s268 + $0x1e0] sm:$0xff]
      %v452 = vld [vmem:[%s268 + $0x1e8] sm:$0xff]
      %v453 = vld [vmem:[%s268 + $0x1f0] sm:$0xff]
      %v454 = vld [vmem:[%s268 + $0x1f8] sm:$0xff]
      %v455 = vld [vmem:[%s268 + $0x200] sm:$0x1]
      %v456 = vperm.slane %v455, 0
      %457 = vmatpush.msra.mxu0 %v406
      %458 = vmatpush.msra.mxu0 %v405
      %459 = vmatpush.msra.mxu0 %v404
      %460 = vmatpush.msra.mxu0 %v403
      %461 = vmatpush.msra.mxu0 %v402
      %462 = vmatpush.msra.mxu0 %v401
      %463 = vmatpush.msra.mxu0 %v400
      %464 = vmatpush.msra.mxu0 %v399
      %465 = vmatpush.msra.mxu0 %v398
      %466 = vmatpush.msra.mxu0 %v397
      %467 = vmatpush.msra.mxu0 %v396
      %468 = vmatpush.msra.mxu0 %v395
      %469 = vmatpush.msra.mxu0 %v394
      %470 = vmatpush.msra.mxu0 %v393
      %471 = vmatpush.msra.mxu0 %v392
      %472 = vmatpush.msra.mxu0 %v391
      %473 = vmatmul.f32.gmra.mxu0 %v387
      %v474 = vpop.f32.mrf.mxu0
      %v475 = vadd.f32 %v456, %v474
      %476 = vdwg.mxu0
      %477 = vmatpush.msra.mxu0 %v422
      %478 = vmatpush.msra.mxu0 %v421
      %479 = vmatpush.msra.mxu0 %v420
      %480 = vmatpush.msra.mxu0 %v419
      %481 = vmatpush.msra.mxu0 %v418
      %482 = vmatpush.msra.mxu0 %v417
      %483 = vmatpush.msra.mxu0 %v416
      %484 = vmatpush.msra.mxu0 %v415
      %485 = vmatpush.msra.mxu0 %v414
      %486 = vmatpush.msra.mxu0 %v413
      %487 = vmatpush.msra.mxu0 %v412
      %488 = vmatpush.msra.mxu0 %v411
      %489 = vmatpush.msra.mxu0 %v410
      %490 = vmatpush.msra.mxu0 %v409
      %491 = vmatpush.msra.mxu0 %v408
      %492 = vmatpush.msra.mxu0 %v407
      %493 = vmatmul.f32.gmra.mxu0 %v388
      %v494 = vpop.f32.mrf.mxu0
      %v495 = vadd.f32 %v475, %v494
      %496 = vdwg.mxu0
      %497 = vmatpush.msra.mxu0 %v438
      %498 = vmatpush.msra.mxu0 %v437
      %499 = vmatpush.msra.mxu0 %v436
      %500 = vmatpush.msra.mxu0 %v435
      %501 = vmatpush.msra.mxu0 %v434
      %502 = vmatpush.msra.mxu0 %v433
      %503 = vmatpush.msra.mxu0 %v432
      %504 = vmatpush.msra.mxu0 %v431
      %505 = vmatpush.msra.mxu0 %v430
      %506 = vmatpush.msra.mxu0 %v429
      %507 = vmatpush.msra.mxu0 %v428
      %508 = vmatpush.msra.mxu0 %v427
      %509 = vmatpush.msra.mxu0 %v426
      %510 = vmatpush.msra.mxu0 %v425
      %511 = vmatpush.msra.mxu0 %v424
      %512 = vmatpush.msra.mxu0 %v423
      %513 = vmatmul.f32.gmra.mxu0 %v389
      %v514 = vpop.f32.mrf.mxu0
      %v515 = vadd.f32 %v495, %v514
      %516 = vdwg.mxu0
      %517 = vmatpush.msra.mxu0 %v454
      %518 = vmatpush.msra.mxu0 %v453
      %519 = vmatpush.msra.mxu0 %v452
      %520 = vmatpush.msra.mxu0 %v451
      %521 = vmatpush.msra.mxu0 %v450
      %522 = vmatpush.msra.mxu0 %v449
      %523 = vmatpush.msra.mxu0 %v448
      %524 = vmatpush.msra.mxu0 %v447
      %525 = vmatpush.msra.mxu0 %v446
      %526 = vmatpush.msra.mxu0 %v445
      %527 = vmatpush.msra.mxu0 %v444
      %528 = vmatpush.msra.mxu0 %v443
      %529 = vmatpush.msra.mxu0 %v442
      %530 = vmatpush.msra.mxu0 %v441
      %531 = vmatpush.msra.mxu0 %v440
      %532 = vmatpush.msra.mxu0 %v439
      %533 = vmatmul.f32.gmra.mxu0 %v390
      %v534 = vpop.f32.mrf.mxu0
      %v535 = vadd.f32 %v515, %v534
      %536 = vdwg.mxu0
      %v537 = vmax.f32 %v535, 0.0
      %v538 = vld [vmem:[%s273] sm:$0xff]
      %v539 = vld [vmem:[%s273 + $0x8] sm:$0xff]
      %v540 = vld [vmem:[%s273 + $0x10] sm:$0xff]
      %v541 = vld [vmem:[%s273 + $0x18] sm:$0xff]
      %v542 = vld [vmem:[%s273 + $0x20] sm:$0xff]
      %v543 = vld [vmem:[%s273 + $0x28] sm:$0xff]
      %v544 = vld [vmem:[%s273 + $0x30] sm:$0xff]
      %v545 = vld [vmem:[%s273 + $0x38] sm:$0xff]
      %v546 = vld [vmem:[%s273 + $0x40] sm:$0xff]
      %v547 = vld [vmem:[%s273 + $0x48] sm:$0xff]
      %v548 = vld [vmem:[%s273 + $0x50] sm:$0xff]
      %v549 = vld [vmem:[%s273 + $0x58] sm:$0xff]
      %v550 = vld [vmem:[%s273 + $0x60] sm:$0xff]
      %v551 = vld [vmem:[%s273 + $0x68] sm:$0xff]
      %v552 = vld [vmem:[%s273 + $0x70] sm:$0xff]
      %v553 = vld [vmem:[%s273 + $0x78] sm:$0xff]
      %v554 = vld [vmem:[%s273 + $0x80] sm:$0x1]
      %v555 = vperm.slane %v554, 0
      %556 = vmatpush.msra.mxu0 %v553
      %557 = vmatpush.msra.mxu0 %v552
      %558 = vmatpush.msra.mxu0 %v551
      %559 = vmatpush.msra.mxu0 %v550
      %560 = vmatpush.msra.mxu0 %v549
      %561 = vmatpush.msra.mxu0 %v548
      %562 = vmatpush.msra.mxu0 %v547
      %563 = vmatpush.msra.mxu0 %v546
      %564 = vmatpush.msra.mxu0 %v545
      %565 = vmatpush.msra.mxu0 %v544
      %566 = vmatpush.msra.mxu0 %v543
      %567 = vmatpush.msra.mxu0 %v542
      %568 = vmatpush.msra.mxu0 %v541
      %569 = vmatpush.msra.mxu0 %v540
      %570 = vmatpush.msra.mxu0 %v539
      %571 = vmatpush.msra.mxu0 %v538
      %572 = vmatmul.f32.gmra.mxu0 %v537
      %v573 = vpop.f32.mrf.mxu0
      %v574 = vadd.f32 %v555, %v573
      %575 = vdwg.mxu0
      %v576 = vmax.f32 %v574, 0.0
      %v577 = vld [vmem:[%s278] sm:$0xff]
      %v578 = vld [vmem:[%s278 + $0x8] sm:$0xff]
      %v579 = vld [vmem:[%s278 + $0x10] sm:$0xff]
      %v580 = vld [vmem:[%s278 + $0x18] sm:$0xff]
      %v581 = vld [vmem:[%s278 + $0x20] sm:$0xff]
      %v582 = vld [vmem:[%s278 + $0x28] sm:$0xff]
      %v583 = vld [vmem:[%s278 + $0x30] sm:$0xff]
      %v584 = vld [vmem:[%s278 + $0x38] sm:$0xff]
      %v585 = vld [vmem:[%s278 + $0x40] sm:$0xff]
      %v586 = vld [vmem:[%s278 + $0x48] sm:$0xff]
      %v587 = vld [vmem:[%s278 + $0x50] sm:$0xff]
      %v588 = vld [vmem:[%s278 + $0x58] sm:$0xff]
      %v589 = vld [vmem:[%s278 + $0x60] sm:$0xff]
      %v590 = vld [vmem:[%s278 + $0x68] sm:$0xff]
      %v591 = vld [vmem:[%s278 + $0x70] sm:$0xff]
      %v592 = vld [vmem:[%s278 + $0x78] sm:$0xff]
      %v593 = vld [vmem:[%s278 + $0x80] sm:$0x1]
      %v594 = vperm.slane %v593, 0
      %595 = vmatpush.msra.mxu0 %v592
      %596 = vmatpush.msra.mxu0 %v591
      %597 = vmatpush.msra.mxu0 %v590
      %598 = vmatpush.msra.mxu0 %v589
      %599 = vmatpush.msra.mxu0 %v588
      %600 = vmatpush.msra.mxu0 %v587
      %601 = vmatpush.msra.mxu0 %v586
      %602 = vmatpush.msra.mxu0 %v585
      %603 = vmatpush.msra.mxu0 %v584
      %604 = vmatpush.msra.mxu0 %v583
      %605 = vmatpush.msra.mxu0 %v582
      %606 = vmatpush.msra.mxu0 %v581
      %607 = vmatpush.msra.mxu0 %v580
      %608 = vmatpush.msra.mxu0 %v579
      %609 = vmatpush.msra.mxu0 %v578
      %610 = vmatpush.msra.mxu0 %v577
      %611 = vmatmul.f32.gmra.mxu0 %v576
      %v612 = vpop.f32.mrf.mxu0
      %v613 = vadd.f32 %v594, %v612
      %614 = vdwg.mxu0
      %615 = vst [vmem:[%s282] sm:$0xff] %v613
      %p616 = scmp.lt.s32.totalorder %s16, 3
      %s617 = scalar_select %p616, %s16, 3
      %s618 = smul.addr %s617, 8
      %s619 = scalar_lea.vmem %s5, %s618
      // Predicated region
      $region41: #{strong_variational_net_forward.1} parent=39 // pred_check
        %p620 = pneg %p159
      $region42: #{strong_variational_net_forward.1} parent=39 // pred_check_branch
        %622 = sbr.rel (%p620) target = $region44
      $region43: #{strong_variational_net_forward.1} parent=39 // pred_region
        _
      $region44: #{strong_variational_net_forward.1} parent=39 // pred_fallthru
        _
    $region40: #{strong_variational_net_forward.1} parent=5 // pred_fallthru
      _
    %p623 = scmp.le.s32.totalorder 2, %s11
    // Predicated region
    $region45: #{strong_variational_net_forward.1} parent=5 // pred_check
      %p624 = pneg %p623
    $region46: #{strong_variational_net_forward.1} parent=5 // pred_check_branch
      %626 = sbr.rel (%p624) target = $region48
    $region47: #{strong_variational_net_forward.1} parent=5 // pred_region
      %s627 = ssub.s32 %s11, 2
      // Predicated region
      $region49: #{strong_variational_net_forward.1} parent=47 // pred_check
        %p628 = pneg %p165
      $region50: #{strong_variational_net_forward.1} parent=47 // pred_check_branch
        %630 = sbr.rel (%p628) target = $region52
      $region51: #{strong_variational_net_forward.1} parent=47 // pred_region
        %p631 = scmp.lt.s32.totalorder %s17, 3
        %s632 = scalar_select %p631, %s17, 3
        %s633 = smul.addr %s632, 8
        %s634 = scalar_lea.vmem %s5, %s633
      $region52: #{strong_variational_net_forward.1} parent=47 // pred_fallthru
        _
    $region48: #{strong_variational_net_forward.1} parent=5 // pred_fallthru
      _
  $region6: #{strong_variational_net_forward.1} parent=0 // loop_footer
    %s15 = sadd.s32 1, %s11
  $region7: #{strong_variational_net_forward.1} parent=0 // loop_footer_branch
    %10 = sbr.rel target = $region3
  $region8: #{strong_variational_net_forward.1} parent=0 // loop_exit
    _

</llo_original>
